<compile_context>
chip_gen: v7x
topology: tpu7x:2x2x1
jax: 0.10.0
libtpu: 0.0.40
codegen_flags: <defaults>
</compile_context>

<pallas_src>
import functools
import math

import jax
import jax.numpy as jnp
from jax.experimental import pallas as pl
from jax.experimental.pallas import tpu as pltpu


# ----------------------------------------------------------------------------------
# Configuration (small, but structurally faithful to ControlNet.__init__)
# ----------------------------------------------------------------------------------
CFG = dict(
    in_channels=32,
    model_channels=32,
    hint_channels=3,
    out_channels=32,            # stored by __init__ but unused in forward
    num_res_blocks=1,
    attention_resolutions=(2,),
    channel_mult=(1, 2),
    num_heads=1,
    num_groups=32,              # GroupNorm32
)

# NOTE: the PyTorch module wraps several layers in zero_module() (all-zero weights).
# We initialize those layers with *small* random weights so the kernels are exercised
# with non-trivial data; set ZERO_MODULE_SCALE = 0.0 for exact parity with zero_module.
ZERO_MODULE_SCALE = 0.05

_PARALLEL1 = pltpu.CompilerParams(dimension_semantics=("parallel",))


def _round_up(x, m):
    return (x + m - 1) // m * m


def _pick_tm(m):
    """Largest M-tile that divides M exactly and still gives >=2 grid steps (megacore)."""
    for tm in (256, 128, 64, 32, 16, 8):
        if m % tm == 0 and m // tm >= 2:
            return tm
    return m


# ----------------------------------------------------------------------------------
# Pallas kernel 1: fused matmul  y = [act](a @ w + b) [+ residual]
#   - a cast to bf16 in-kernel, w pre-cast to bf16, accumulation/epilogue in f32
#   - whole K and whole N in one block (both are small); grid only over M
# ----------------------------------------------------------------------------------
def _mm_kernel(*refs, act, has_res):
    a_ref, w_ref, b_ref = refs[0], refs[1], refs[2]
    i = 3
    res_ref = None
    if has_res:
        res_ref = refs[i]
        i += 1
    o_ref = refs[i]

    y = jnp.dot(a_ref[...].astype(jnp.bfloat16), w_ref[...],
                preferred_element_type=jnp.float32)
    y = y + b_ref[...]
    if act == "silu":
        y = y * jax.nn.sigmoid(y)
    if has_res:
        y = y + res_ref[...]
    o_ref[...] = y


def matmul_fused(a, p, act=None, residual=None):
    """a:(M,K) f32, p['w']:(K,N) bf16, p['b']:(1,N) f32, residual:(M,N) f32 -> (M,N) f32."""
    M, K = a.shape
    Kw, Nout = p["w"].shape
    assert K == Kw, (K, Kw)
    tm = _pick_tm(M)
    in_specs = [
        pl.BlockSpec((tm, K), lambda i: (i, 0)),
        pl.BlockSpec((K, Nout), lambda i: (0, 0)),
        pl.BlockSpec((1, Nout), lambda i: (0, 0)),
    ]
    args = [a, p["w"], p["b"]]
    if residual is not None:
        in_specs.append(pl.BlockSpec((tm, Nout), lambda i: (i, 0)))
        args.append(residual)
    return pl.pallas_call(
        functools.partial(_mm_kernel, act=act, has_res=residual is not None),
        out_shape=jax.ShapeDtypeStruct((M, Nout), jnp.float32),
        grid=(M // tm,),
        in_specs=in_specs,
        out_specs=pl.BlockSpec((tm, Nout), lambda i: (i, 0)),
        compiler_params=_PARALLEL1,
    )(*args)


# ----------------------------------------------------------------------------------
# Pallas kernel 2: 3x3 stride-1 conv, taps accumulated in VMEM (no HBM im2col)
#   optional fused: per-sample emb add, SiLU, residual add
# ----------------------------------------------------------------------------------
def _conv3x3_kernel(*refs, act, has_emb, has_res, H, W):
    x_ref, w_ref, b_ref = refs[0], refs[1], refs[2]
    i = 3
    emb_ref = res_ref = None
    if has_emb:
        emb_ref = refs[i]
        i += 1
    if has_res:
        res_ref = refs[i]
        i += 1
    o_ref = refs[i]

    xp = x_ref[0]                                   # (H+2, Wp, Cin) f32, halo-padded
    cin = xp.shape[-1]
    cout = w_ref.shape[2]
    acc = jnp.zeros((H * W, cout), jnp.float32)
    for ky in range(3):
        for kx in range(3):
            patch = xp[ky:ky + H, kx:kx + W, :].reshape(H * W, cin)
            acc = acc + jnp.dot(patch.astype(jnp.bfloat16), w_ref[ky * 3 + kx],
                                preferred_element_type=jnp.float32)
    y = acc + b_ref[...]
    if has_emb:
        y = y + emb_ref[...]
    if act == "silu":
        y = y * jax.nn.sigmoid(y)
    if has_res:
        y = y + res_ref[0]
    o_ref[0] = y


def conv3x3(x, p, act=None, emb=None, residual=None):
    """stride-1, padding-1 3x3 conv on NHWC x; p['w']:(9,Cin,Cout) bf16, p['b']:(1,Cout)."""
    N, H, W, C = x.shape
    Cout = p["w"].shape[-1]
    Wp = _round_up(W + 2, 8)                        # keep sublane dim 8-aligned
    xp = jnp.pad(x, ((0, 0), (1, 1), (1, Wp - W - 1), (0, 0)))

    in_specs = [
        pl.BlockSpec((1, H + 2, Wp, C), lambda n: (n, 0, 0, 0)),
        pl.BlockSpec((9, C, Cout), lambda n: (0, 0, 0)),
        pl.BlockSpec((1, Cout), lambda n: (0, 0)),
    ]
    args = [xp, p["w"], p["b"]]
    if emb is not None:
        in_specs.append(pl.BlockSpec((1, Cout), lambda n: (n, 0)))
        args.append(emb)
    if residual is not None:
        in_specs.append(pl.BlockSpec((1, H * W, Cout), lambda n: (n, 0, 0)))
        args.append(residual.reshape(N, H * W, Cout))

    out = pl.pallas_call(
        functools.partial(_conv3x3_kernel, act=act, has_emb=emb is not None,
                          has_res=residual is not None, H=H, W=W),
        out_shape=jax.ShapeDtypeStruct((N, H * W, Cout), jnp.float32),
        grid=(N,),
        in_specs=in_specs,
        out_specs=pl.BlockSpec((1, H * W, Cout), lambda n: (n, 0, 0)),
        compiler_params=_PARALLEL1,
    )(*args)
    return out.reshape(N, H, W, Cout)


# ----------------------------------------------------------------------------------
# Pallas kernel 3: GroupNorm (NSC layout, per-sample grid, single-pass stats, fused SiLU)
# ----------------------------------------------------------------------------------
def _gn_kernel(x_ref, g_ref, b_ref, o_ref, *, G, eps, act):
    x = x_ref[0]                                    # (S, C) f32
    S, C = x.shape
    Cg = C // G
    s1 = jnp.sum(x, axis=0, keepdims=True)          # (1, C)
    s2 = jnp.sum(x * x, axis=0, keepdims=True)      # (1, C)
    inv_n = 1.0 / (S * Cg)
    if Cg == 1:                                     # groups == channels: no cross-lane pooling
        mean_c = s1 * inv_n
        ex2_c = s2 * inv_n
    else:                                           # pool within-group channels via tiny matmul
        ci = jax.lax.broadcasted_iota(jnp.int32, (C, C), 0) // Cg
        cj = jax.lax.broadcasted_iota(jnp.int32, (C, C), 1) // Cg
        pool = jnp.where(ci == cj, inv_n, 0.0).astype(jnp.float32)   # (C, C) group-average matrix
        mean_c = jnp.dot(s1, pool, preferred_element_type=jnp.float32)
        ex2_c = jnp.dot(s2, pool, preferred_element_type=jnp.float32)
    var_c = ex2_c - mean_c * mean_c
    inv_c = jax.lax.rsqrt(var_c + eps)
    y = (x - mean_c) * inv_c * g_ref[...] + b_ref[...]
    if act:
        y = y * jax.nn.sigmoid(y)                   # fused SiLU
    o_ref[0] = y


def group_norm_nsc(x, p, act=False, num_groups=32, eps=1e-5):
    """GroupNorm over (N, S, C), equivalent to torch.nn.GroupNorm on (N, C, S)."""
    N, S, C = x.shape
    return pl.pallas_call(
        functools.partial(_gn_kernel, G=num_groups, eps=eps, act=act),
        out_shape=jax.ShapeDtypeStruct((N, S, C), jnp.float32),
        grid=(N,),
        in_specs=[
            pl.BlockSpec((1, S, C), lambda n: (n, 0, 0)),
            pl.BlockSpec((1, C), lambda n: (0, 0)),
            pl.BlockSpec((1, C), lambda n: (0, 0)),
        ],
        out_specs=pl.BlockSpec((1, S, C), lambda n: (n, 0, 0)),
        compiler_params=_PARALLEL1,
    )(x, p["g"], p["b"])


def group_norm_nhwc(x, p, act=False):
    N, H, W, C = x.shape
    return group_norm_nsc(x.reshape(N, H * W, C), p, act=act,
                          num_groups=CFG["num_groups"]).reshape(N, H, W, C)


# ----------------------------------------------------------------------------------
# Pallas kernel 4: QKV attention, one (batch*head) per parallel grid step
# ----------------------------------------------------------------------------------
def _attn_kernel(q_ref, k_ref, v_ref, o_ref, *, scale):
    q = (q_ref[0] * scale).astype(jnp.bfloat16)     # (T, ch)
    k = (k_ref[0] * scale).astype(jnp.bfloat16)
    s = jax.lax.dot_general(q, k, (((1,), (1,)), ((), ())),
                            preferred_element_type=jnp.float32)          # (T, T)
    s = s - jnp.max(s, axis=-1, keepdims=True)
    p = jnp.exp(s)
    p = p * pl.reciprocal(jnp.sum(p, axis=-1, keepdims=True), approx=True)
    o_ref[0] = jnp.dot(p.astype(jnp.bfloat16), v_ref[0].astype(jnp.bfloat16),
                       preferred_element_type=jnp.float32)               # (T, ch)


def qkv_attention_pallas(q, k, v, scale):
    # TODO(synk): for real ControlNet resolutions (T>=4k) switch to a flash-style kv-tiled
    #             online-softmax grid so the (T,T) score tile fits v7x's 64 MiB VMEM.
    B, T, ch = q.shape
    spec = pl.BlockSpec((1, T, ch), lambda b: (b, 0, 0))
    return pl.pallas_call(
        functools.partial(_attn_kernel, scale=scale),
        out_shape=jax.ShapeDtypeStruct((B, T, ch), jnp.float32),
        grid=(B,),
        in_specs=[spec, spec, spec],
        out_specs=spec,
        compiler_params=_PARALLEL1,
    )(q, k, v)


# ----------------------------------------------------------------------------------
# Conv wrappers built on the Pallas kernels
# ----------------------------------------------------------------------------------
def _extract_patches(x, k, stride, pad):
    """im2col for NHWC (only used for the single stride-2 Downsample conv)."""
    N, H, W, C = x.shape
    xp = jnp.pad(x, ((0, 0), (pad, pad), (pad, pad), (0, 0)))
    Ho = (H + 2 * pad - k) // stride + 1
    Wo = (W + 2 * pad - k) // stride + 1
    cols = []
    for dy in range(k):
        for dx in range(k):
            cols.append(xp[:, dy:dy + stride * Ho:stride, dx:dx + stride * Wo:stride, :])
    return jnp.concatenate(cols, axis=-1)           # (N, Ho, Wo, 9*C)


def downsample_conv(x, p):
    # TODO(synk): stride-2 conv keeps a (small) wrapper-side im2col; an in-kernel strided-tap
    #             variant would avoid it but strided sublane loads are riskier to lower.
    N, H, W, C = x.shape
    patches = _extract_patches(x, 3, 2, 1)
    _, Ho, Wo, _ = patches.shape
    wflat = p["w"].reshape(9 * C, -1)
    y = matmul_fused(patches.reshape(N * Ho * Wo, 9 * C), {"w": wflat, "b": p["b"]})
    return y.reshape(N, Ho, Wo, -1)


def conv1x1(x, p, residual=None):
    N, H, W, C = x.shape
    res2 = residual.reshape(N * H * W, -1) if residual is not None else None
    y = matmul_fused(x.reshape(N * H * W, C), p, residual=res2)
    return y.reshape(N, H, W, -1)


# ----------------------------------------------------------------------------------
# Model blocks (semantics of guided-diffusion ResBlock / AttentionBlock / Downsample)
# ----------------------------------------------------------------------------------
def res_block(x, emb_silu, p):
    """use_scale_shift_norm=False, dropout=0; emb_silu is SiLU(emb), hoisted once per forward."""
    N, H, W, Cin = x.shape
    Cout = p["conv1"]["w"].shape[-1]
    emb_out = matmul_fused(emb_silu, p["emb"])               # (N, Cout)
    h = group_norm_nhwc(x, p["gn1"], act=True)               # norm -> SiLU (fused)
    h = conv3x3(h, p["conv1"], emb=emb_out)                  # 3x3 conv + fused per-sample emb add
    h = group_norm_nhwc(h, p["gn2"], act=True)               # norm -> SiLU (fused); dropout p=0
    if "skip" in p:                                          # 1x1 conv skip (channel change)
        skip = matmul_fused(x.reshape(N * H * W, Cin), p["skip"]).reshape(N, H, W, Cout)
    else:
        skip = x
    return conv3x3(h, p["conv2"], residual=skip)             # zero-module conv + fused skip add


def attention_block(x, p, num_heads):
    N, H, W, C = x.shape
    T = H * W
    ch = C // num_heads
    xs = x.reshape(N, T, C)
    xn = group_norm_nsc(xs, p["norm"], act=False, num_groups=CFG["num_groups"])
    qkv = matmul_fused(xn.reshape(N * T, C), p["qkv"]).reshape(N, T, num_heads, 3, ch)
    # guided-diffusion QKVAttentionLegacy channel order: per head [q, k, v]
    q = qkv[:, :, :, 0, :].transpose(0, 2, 1, 3).reshape(N * num_heads, T, ch)
    k = qkv[:, :, :, 1, :].transpose(0, 2, 1, 3).reshape(N * num_heads, T, ch)
    v = qkv[:, :, :, 2, :].transpose(0, 2, 1, 3).reshape(N * num_heads, T, ch)
    scale = 1.0 / math.sqrt(math.sqrt(ch))
    a = qkv_attention_pallas(q, k, v, scale)                 # (N*nh, T, ch)
    hcat = a.reshape(N, num_heads, T, ch).transpose(0, 2, 1, 3).reshape(N * T, C)
    out = matmul_fused(hcat, p["proj"], residual=xs.reshape(N * T, C))   # proj + fused residual
    return out.reshape(N, H, W, C)


def apply_input_block(blk, h, emb_silu, num_heads):
    if "conv" in blk:
        return conv3x3(h, blk["conv"])
    if "down" in blk:                                        # Downsample: 3x3 conv stride 2
        return downsample_conv(h, blk["down"])
    h = res_block(h, emb_silu, blk["res"])
    if "attn" in blk:
        h = attention_block(h, blk["attn"], num_heads)
    return h


def timestep_embedding(timesteps, dim, max_period=10000):
    half = dim // 2
    freqs = jnp.exp(-math.log(max_period) * jnp.arange(half, dtype=jnp.float32) / half)
    args = timesteps.astype(jnp.float32)[:, None] * freqs[None]
    return jnp.concatenate([jnp.cos(args), jnp.sin(args)], axis=-1)


# ----------------------------------------------------------------------------------
# Parameter construction (deterministic, pre-packed: bf16 weights, (1,C) biases)
# ----------------------------------------------------------------------------------
def init_conv3x3(key, cin, cout, scale_mult=1.0):
    kw, kb = jax.random.split(key)
    s = scale_mult / math.sqrt(cin * 9)
    return {"w": (jax.random.normal(kw, (9, cin, cout), jnp.float32) * s).astype(jnp.bfloat16),
            "b": jax.random.normal(kb, (1, cout), jnp.float32) * s}


def init_linear(key, cin, cout, scale_mult=1.0):
    kw, kb = jax.random.split(key)
    s = scale_mult / math.sqrt(cin)
    return {"w": (jax.random.normal(kw, (cin, cout), jnp.float32) * s).astype(jnp.bfloat16),
            "b": jax.random.normal(kb, (1, cout), jnp.float32) * s}


def init_gn(c):
    return {"g": jnp.ones((1, c), jnp.float32), "b": jnp.zeros((1, c), jnp.float32)}


def build_params(key, cfg):
    keys = iter(jax.random.split(key, 512))
    nk = lambda: next(keys)
    mc = cfg["model_channels"]
    ted = mc * 4

    def make_res(cin, cout):
        d = {"gn1": init_gn(cin),
             "conv1": init_conv3x3(nk(), cin, cout),
             "emb": init_linear(nk(), ted, cout),
             "gn2": init_gn(cout),
             "conv2": init_conv3x3(nk(), cout, cout, scale_mult=ZERO_MODULE_SCALE)}
        if cin != cout:
            d["skip"] = init_linear(nk(), cin, cout)         # 1x1 conv skip
        return d

    def make_attn(c):
        return {"norm": init_gn(c),
                "qkv": init_linear(nk(), c, 3 * c),
                "proj": init_linear(nk(), c, c, scale_mult=ZERO_MODULE_SCALE)}

    P = {}
    P["time1"] = init_linear(nk(), mc, ted)
    P["time2"] = init_linear(nk(), ted, ted)
    P["hint1"] = init_conv3x3(nk(), cfg["hint_channels"], 16)
    P["hint2"] = init_conv3x3(nk(), 16, cfg["in_channels"], scale_mult=ZERO_MODULE_SCALE)

    input_blocks = [{"conv": init_conv3x3(nk(), cfg["in_channels"], mc)}]
    zero_convs = [init_linear(nk(), mc, mc, scale_mult=ZERO_MODULE_SCALE)]
    ch, ds = mc, 1
    for level, mult in enumerate(cfg["channel_mult"]):
        for _ in range(cfg["num_res_blocks"]):
            blk = {"res": make_res(ch, mult * mc)}
            ch = mult * mc
            if ds in cfg["attention_resolutions"]:
                blk["attn"] = make_attn(ch)
            input_blocks.append(blk)
            zero_convs.append(init_linear(nk(), ch, ch, scale_mult=ZERO_MODULE_SCALE))
        if level != len(cfg["channel_mult"]) - 1:
            input_blocks.append({"down": init_conv3x3(nk(), ch, ch)})
            zero_convs.append(init_linear(nk(), ch, ch, scale_mult=ZERO_MODULE_SCALE))
            ds *= 2
    P["input_blocks"] = input_blocks
    P["zero_convs"] = zero_convs
    P["mid_res1"] = make_res(ch, ch)
    P["mid_attn"] = make_attn(ch)
    P["mid_res2"] = make_res(ch, ch)
    P["mid_out"] = init_linear(nk(), ch, ch, scale_mult=ZERO_MODULE_SCALE)
    return P


# ----------------------------------------------------------------------------------
# ControlNet.forward
# ----------------------------------------------------------------------------------
def controlnet_forward(params, x_nchw, hint_nchw, timesteps):
    cfg = CFG
    mc = cfg["model_channels"]
    x = jnp.transpose(x_nchw, (0, 2, 3, 1)).astype(jnp.float32)
    hint = jnp.transpose(hint_nchw, (0, 2, 3, 1)).astype(jnp.float32)

    # time embedding MLP: linear -> SiLU -> linear; every consumer of `emb` applies SiLU
    # first (ResBlock emb_layers), so the trailing SiLU is fused here once per forward.
    temb = timestep_embedding(timesteps, mc)
    emb1 = matmul_fused(temb, params["time1"], act="silu")
    emb_silu = matmul_fused(emb1, params["time2"], act="silu")
    # TODO(synk): class-conditional label_emb path skipped (num_classes=None in this config).

    # input_hint_block: conv3x3 -> SiLU (fused) -> zero conv3x3
    gh = conv3x3(hint, params["hint1"], act="silu")
    guided_hint = conv3x3(gh, params["hint2"])

    outs = []
    h = x
    for idx, (blk, zc) in enumerate(zip(params["input_blocks"], params["zero_convs"])):
        if idx == 0:
            # first block is a plain conv; `h += guided_hint` is fused into its epilogue
            h = conv3x3(h, blk["conv"], residual=guided_hint)
        else:
            h = apply_input_block(blk, h, emb_silu, cfg["num_heads"])
        outs.append(conv1x1(h, zc))

    # middle block: ResBlock -> Attention -> ResBlock, then zero 1x1 conv
    h = res_block(h, emb_silu, params["mid_res1"])
    h = attention_block(h, params["mid_attn"], cfg["num_heads"])
    h = res_block(h, emb_silu, params["mid_res2"])
    outs.append(conv1x1(h, params["mid_out"]))

    # NHWC -> NCHW for the PyTorch-matching output convention
    return [jnp.transpose(o, (0, 3, 1, 2)) for o in outs]


# ----------------------------------------------------------------------------------
if __name__ == "__main__":
    key = jax.random.PRNGKey(0)
    kp, kx, kh, k1, k2, k3 = jax.random.split(key, 6)

    # sanity 1: fused matmul kernel vs bf16 jnp reference
    a = jax.random.normal(k1, (128, 96), jnp.float32)
    wp = init_linear(k2, 96, 48)
    ref = jnp.dot(a.astype(jnp.bfloat16), wp["w"], preferred_element_type=jnp.float32) + wp["b"]
    got = matmul_fused(a, wp)
    assert jnp.allclose(got, ref, atol=2e-2, rtol=2e-2), float(jnp.max(jnp.abs(got - ref)))

    # sanity 2: GroupNorm kernel (C=64, Cg=2 exercises the within-group pooling path)
    xg = jax.random.normal(k3, (2, 64, 64), jnp.float32)
    gn = group_norm_nsc(xg, init_gn(64), act=False, num_groups=32)
    xr = xg.reshape(2, 64, 32, 2)
    m = xr.mean(axis=(1, 3), keepdims=True)
    v = xr.var(axis=(1, 3), keepdims=True)
    gn_ref = ((xr - m) / jnp.sqrt(v + 1e-5)).reshape(2, 64, 64)
    assert jnp.allclose(gn, gn_ref, atol=2e-3, rtol=2e-3), float(jnp.max(jnp.abs(gn - gn_ref)))

    params = build_params(kp, CFG)

    N, H, W = 2, 16, 16
    x = jax.random.normal(kx, (N, CFG["in_channels"], H, W), jnp.float32)
    hint = jax.random.normal(kh, (N, CFG["hint_channels"], H, W), jnp.float32)
    timesteps = jnp.array([3.0, 47.0], jnp.float32)

    outs = jax.jit(controlnet_forward)(params, x, hint, timesteps)
    outs = jax.block_until_ready(outs)

    expected_shapes = [(N, 32, 16, 16), (N, 32, 16, 16), (N, 32, 8, 8),
                       (N, 64, 8, 8), (N, 64, 8, 8)]
    assert [tuple(o.shape) for o in outs] == expected_shapes, \
        [tuple(o.shape) for o in outs]
    assert all(bool(jnp.all(jnp.isfinite(o))) for o in outs)

    print("KERNEL_OK")
</pallas_src>

<mosaic_0001>
module attributes {stable_mosaic.version = 11 : i64} {
  func.func @_mm_kernel(%arg0: i32, %arg1: memref<64x96xf32, #tpu.memory_space<vmem>>, %arg2: memref<96x48xbf16, #tpu.memory_space<vmem>>, %arg3: memref<1x48xf32, #tpu.memory_space<vmem>>, %arg4: memref<64x48xf32, #tpu.memory_space<vmem>>) attributes {dimension_semantics = [#tpu.dimension_semantics<parallel>], iteration_bounds = array<i64: 2>, scalar_prefetch = 0 : i64, scratch_operands = 0 : i64, tpu.core_type = #tpu.core_type<tc>, window_params = [{transform_indices = @transform_0, window_bounds = array<i64: 64, 96>}, {pipeline_mode = #tpu.pipeline_mode<synchronous>, transform_indices = @transform_1, window_bounds = array<i64: 96, 48>}, {pipeline_mode = #tpu.pipeline_mode<synchronous>, transform_indices = @transform_2, window_bounds = array<i64: 1, 48>}, {transform_indices = @transform_3, window_bounds = array<i64: 64, 48>}]} {
    %c0 = arith.constant 0 : index
    %c0_0 = arith.constant 0 : index
    %0 = vector.load %arg1[%c0, %c0_0] : memref<64x96xf32, #tpu.memory_space<vmem>>, vector<64x96xf32>
    %1 = arith.truncf %0 : vector<64x96xf32> to vector<64x96xbf16>
    %c0_1 = arith.constant 0 : index
    %c0_2 = arith.constant 0 : index
    %2 = vector.load %arg2[%c0_1, %c0_2] : memref<96x48xbf16, #tpu.memory_space<vmem>>, vector<96x48xbf16>
    %cst = arith.constant dense<0.000000e+00> : vector<64x48xf32>
    %3 = tpu.matmul %1, %2, %cst {dimension_numbers = #tpu.dot_dimension_numbers<[1], [0], [0], [1], [0, 0, 1, 1], [], []>} : vector<64x96xbf16>, vector<96x48xbf16>, vector<64x48xf32> -> vector<64x48xf32>
    %c0_3 = arith.constant 0 : index
    %c0_4 = arith.constant 0 : index
    %4 = vector.load %arg3[%c0_3, %c0_4] : memref<1x48xf32, #tpu.memory_space<vmem>>, vector<1x48xf32>
    %5 = vector.broadcast %4 : vector<1x48xf32> to vector<64x48xf32>
    %6 = arith.addf %3, %5 : vector<64x48xf32>
    %c0_5 = arith.constant 0 : index
    %c0_6 = arith.constant 0 : index
    %7 = vector.load %arg4[%c0_5, %c0_6] : memref<64x48xf32, #tpu.memory_space<vmem>>, vector<64x48xf32>
    tpu.vector_store %arg4[%c0_5, %c0_6], %6 {strides = array<i32>} : memref<64x48xf32, #tpu.memory_space<vmem>>, vector<64x48xf32>,
    return
  }
  func.func @transform_0(%arg0: i32) -> (i32, i32) {
    %c0_i32 = arith.constant 0 : i32
    %c0_i32_0 = arith.constant 0 : i32
    return %arg0, %c0_i32 : i32, i32
  }
  func.func @transform_1(%arg0: i32) -> (i32, i32) {
    %c0_i32 = arith.constant 0 : i32
    %c0_i32_0 = arith.constant 0 : i32
    %c0_i32_1 = arith.constant 0 : i32
    return %c0_i32, %c0_i32_0 : i32, i32
  }
  func.func @transform_2(%arg0: i32) -> (i32, i32) {
    %c0_i32 = arith.constant 0 : i32
    %c0_i32_0 = arith.constant 0 : i32
    %c0_i32_1 = arith.constant 0 : i32
    return %c0_i32, %c0_i32_0 : i32, i32
  }
  func.func @transform_3(%arg0: i32) -> (i32, i32) {
    %c0_i32 = arith.constant 0 : i32
    %c0_i32_0 = arith.constant 0 : i32
    return %arg0, %c0_i32 : i32, i32
  }
}

</mosaic_0001>

<llo_original>
// kernel: tpu_custom_call.1
$region0: #{tpu_custom_call.1}
  #allocation0 [shape = 'u32[]', space=smem, size = 0x4, offset = 0x4, fixed_abs, tag = 'smem constant byte address 0x4 - core index']
  #allocation1 [shape = 'u32[144,128]{1,0:T(1,128)}', space=vmem, size = 0x12000, scoped, tag = 'internal scratch']
  %s0 = inlined_call_operand.vmem [shape: f32[128,96], index: 0, kind: input, shape index: {}]
  %s1 = inlined_call_operand.vmem [shape: bf16[96,48], index: 1, kind: input, shape index: {}]
  %s2 = inlined_call_operand.vmem [shape: f32[1,48], index: 2, kind: input, shape index: {}]
  %s3 = inlined_call_operand.vmem [shape: f32[128,48], index: 3, kind: output, shape index: {}]
  %s4 = sld [smem:[#allocation0]]
  $region45: #{tpu_custom_call.1} parent=0
    _
  %s6 = ssub.s32 1, %s4
  %s7 = scalar_select 0, %s6, %s4
  loop: start=0, step=1, limit=4
  $region2: #{tpu_custom_call.1} parent=0 // loop_pre_header
    _
  $region3: #{tpu_custom_call.1} parent=0 // loop_header
    %s9 = sphi 0, %s13
    %p10 = scmp.ge.s32.totalorder %s9, 4
    %s19 = sphi 0, %s21
    %s22 = sphi 0, %s19
    %s23 = sphi 0, %s22
    %s39 = sphi 0, %s23
    %s43 = sphi 0, %s43
    %s45 = sphi 0, %s43
    %s46 = sphi 0, %s45
    %s60 = sphi 0, %s46
    %s64 = sphi 0, %s64
    %s66 = sphi 0, %s64
    %s67 = sphi 0, %s66
    %s81 = sphi 0, %s67
    %s87 = sphi 0, %s89
    %s90 = sphi 0, %s87
    %s91 = sphi 0, %s90
    %s107 = sphi 0, %s91
  $region4: #{tpu_custom_call.1} parent=0 // loop_header_branch
    %12 = sbr.rel (%p10) target = $region8
  $region5: #{tpu_custom_call.1} parent=0 // loop_body
    %s14 = ssub.s32 %s9, 1
    %s15 = ssub.s32 %s9, 2
    %s16 = sadd.s32 %s9, 1
    %s17 = ssub.s32 %s9, %s16
    %p18 = scmp.eq.s32.totalorder %s17, 0
    %s20 = sadd.s32 %s19, 1
    %s21 = scalar_select %p18, %s19, %s20
    %p24 = pneg %p18
    %p25 = scmp.eq.s32.totalorder %s9, 1
    %p26 = por %p24, %p25
    %p27 = scmp.ne.s32.totalorder %s19, %s22
    %p28 = scmp.eq.s32.totalorder %s9, 0
    %p29 = por %p27, %p28
    %p30 = scmp.ne.s32.totalorder %s19, %s22
    %p31 = scmp.eq.s32.totalorder %s14, 1
    %p32 = por %p30, %p31
    %p33 = scmp.ne.s32.totalorder %s22, %s23
    %p34 = scmp.eq.s32.totalorder %s14, 0
    %p35 = por %p33, %p34
    %p36 = scmp.ne.s32.totalorder %s22, %s23
    %p37 = scmp.eq.s32.totalorder %s15, 1
    %p38 = por %p36, %p37
    %p40 = scmp.ne.s32.totalorder %s23, %s39
    %p41 = scmp.eq.s32.totalorder %s15, 0
    %p42 = por %p40, %p41
    %s44 = sadd.s32 %s43, 1
    %p47 = scmp.eq.s32.totalorder %s9, 1
    %p48 = scmp.ne.s32.totalorder %s43, %s45
    %p49 = scmp.eq.s32.totalorder %s9, 0
    %p50 = por %p48, %p49
    %p51 = scmp.ne.s32.totalorder %s43, %s45
    %p52 = scmp.eq.s32.totalorder %s14, 1
    %p53 = por %p51, %p52
    %p54 = scmp.ne.s32.totalorder %s45, %s46
    %p55 = scmp.eq.s32.totalorder %s14, 0
    %p56 = por %p54, %p55
    %p57 = scmp.ne.s32.totalorder %s45, %s46
    %p58 = scmp.eq.s32.totalorder %s15, 1
    %p59 = por %p57, %p58
    %p61 = scmp.ne.s32.totalorder %s46, %s60
    %p62 = scmp.eq.s32.totalorder %s15, 0
    %p63 = por %p61, %p62
    %s65 = sadd.s32 %s64, 1
    %p68 = scmp.eq.s32.totalorder %s9, 1
    %p69 = scmp.ne.s32.totalorder %s64, %s66
    %p70 = scmp.eq.s32.totalorder %s9, 0
    %p71 = por %p69, %p70
    %p72 = scmp.ne.s32.totalorder %s64, %s66
    %p73 = scmp.eq.s32.totalorder %s14, 1
    %p74 = por %p72, %p73
    %p75 = scmp.ne.s32.totalorder %s66, %s67
    %p76 = scmp.eq.s32.totalorder %s14, 0
    %p77 = por %p75, %p76
    %p78 = scmp.ne.s32.totalorder %s66, %s67
    %p79 = scmp.eq.s32.totalorder %s15, 1
    %p80 = por %p78, %p79
    %p82 = scmp.ne.s32.totalorder %s67, %s81
    %p83 = scmp.eq.s32.totalorder %s15, 0
    %p84 = por %p82, %p83
    %s85 = ssub.s32 %s9, %s16
    %p86 = scmp.eq.s32.totalorder %s85, 0
    %s88 = sadd.s32 %s87, 1
    %s89 = scalar_select %p86, %s87, %s88
    %p92 = pneg %p86
    %p93 = scmp.eq.s32.totalorder %s9, 1
    %p94 = por %p92, %p93
    %p95 = scmp.ne.s32.totalorder %s87, %s90
    %p96 = scmp.eq.s32.totalorder %s9, 0
    %p97 = por %p95, %p96
    %p98 = scmp.ne.s32.totalorder %s87, %s90
    %p99 = scmp.eq.s32.totalorder %s14, 1
    %p100 = por %p98, %p99
    %p101 = scmp.ne.s32.totalorder %s90, %s91
    %p102 = scmp.eq.s32.totalorder %s14, 0
    %p103 = por %p101, %p102
    %p104 = scmp.ne.s32.totalorder %s90, %s91
    %p105 = scmp.eq.s32.totalorder %s15, 1
    %p106 = por %p104, %p105
    %p108 = scmp.ne.s32.totalorder %s91, %s107
    %p109 = scmp.eq.s32.totalorder %s15, 0
    %p110 = por %p108, %p109
    %p111 = scmp.le.s32.totalorder 1, %s9
    %p112 = scmp.lt.s32.totalorder %s9, 3
    %p113 = pnand %p111, %p112
    %p114 = pneg %p113
    // Predicated region
    $region9: #{tpu_custom_call.1} parent=5 // pred_check
      _
    $region10: #{tpu_custom_call.1} parent=5 // pred_check_branch
      %116 = sbr.rel (%p113) target = $region12
    $region11: #{tpu_custom_call.1} parent=5 // pred_region
      %s117 = ssub.s32 %s9, 1
      // Predicated region
      $region13: #{tpu_custom_call.1} parent=11 // pred_check
        %p118 = pneg %p56
      $region14: #{tpu_custom_call.1} parent=11 // pred_check_branch
        %120 = sbr.rel (%p118) target = $region16
      $region15: #{tpu_custom_call.1} parent=11 // pred_region
        _
      $region16: #{tpu_custom_call.1} parent=11 // pred_fallthru
        _
      // Predicated region
      $region17: #{tpu_custom_call.1} parent=11 // pred_check
        %p121 = pneg %p77
      $region18: #{tpu_custom_call.1} parent=11 // pred_check_branch
        %123 = sbr.rel (%p121) target = $region20
      $region19: #{tpu_custom_call.1} parent=11 // pred_region
        _
      $region20: #{tpu_custom_call.1} parent=11 // pred_fallthru
        _
    $region12: #{tpu_custom_call.1} parent=5 // pred_fallthru
      _
    %p124 = scmp.lt.s32.totalorder %s9, 2
    // Predicated region
    $region21: #{tpu_custom_call.1} parent=5 // pred_check
      %p125 = pneg %p124
    $region22: #{tpu_custom_call.1} parent=5 // pred_check_branch
      %127 = sbr.rel (%p125) target = $region24
    $region23: #{tpu_custom_call.1} parent=5 // pred_region
      // Predicated region
      $region25: #{tpu_custom_call.1} parent=23 // pred_check
        %p128 = pneg %p29
      $region26: #{tpu_custom_call.1} parent=23 // pred_check_branch
        %130 = sbr.rel (%p128) target = $region28
      $region27: #{tpu_custom_call.1} parent=23 // pred_region
        %s131 = smul.u32 8, %s9
        %p132 = scmp.lt.s32.totalorder %s131, 15
        %s133 = scalar_select %p132, %s131, 15
        %s134 = smul.addr %s133, 8
        %s135 = scalar_lea.vmem %s0, %s134
        %s136 = smul.u32 8, %s9
      $region28: #{tpu_custom_call.1} parent=23 // pred_fallthru
        _
    $region24: #{tpu_custom_call.1} parent=5 // pred_fallthru
      _
    %p137 = scmp.le.s32.totalorder 1, %s9
    %p138 = scmp.lt.s32.totalorder %s9, 3
    %p139 = pnand %p137, %p138
    %p140 = pneg %p139
    // Predicated region
    $region29: #{tpu_custom_call.1} parent=5 // pred_check
      _
    $region30: #{tpu_custom_call.1} parent=5 // pred_check_branch
      %142 = sbr.rel (%p139) target = $region32
    $region31: #{tpu_custom_call.1} parent=5 // pred_region
      %s143 = ssub.s32 %s9, 1
      %s144 = smul.u32 8, %s14
      %p145 = scmp.lt.s32.totalorder %s144, 15
      %s146 = scalar_select %p145, %s144, 15
      %s147 = smul.addr %s146, 8
      %s148 = scalar_lea.vmem %s0, %s147
      %p149 = pneg %p35
      %p150 = pneg %p32
      %p151 = pneg %p56
      %p152 = pneg %p53
      %p153 = pneg %p77
      %p154 = pneg %p74
      %p155 = pneg %p103
      %p156 = pneg %p100
      %s157 = smul.u32 8, %s14
      %p158 = scmp.lt.s32.totalorder %s157, 15
      %s159 = scalar_select %p158, %s157, 15
      %s160 = smul.addr %s159, 8
      %s161 = scalar_lea.vmem %s3, %s160
      %s162 = smul.u32 8, %s14
      %p163 = scmp.lt.s32.totalorder %s162, 15
      %s164 = scalar_select %p163, %s162, 15
      %s165 = smul.addr %s164, 8
      %s166 = scalar_lea.vmem %s0, %s165
      %s167 = smul.u32 8, %s14
      %s168 = smul.u32 8, %s14
      %p169 = scmp.lt.s32.totalorder %s168, 15
      %s170 = scalar_select %p169, %s168, 15
      %s171 = smul.addr %s170, 8
      %s172 = scalar_lea.vmem %s3, %s171
      %s173 = smul.u32 8, %s14
      %v175 = vld [vmem:[%s166] sm:$0xff]
      %v176 = vld [vmem:[%s166 + $0x8] sm:$0xff]
      %v177 = vld [vmem:[%s166 + $0x10] sm:$0xff]
      %v178 = vld [vmem:[%s166 + $0x18] sm:$0xff]
      %v179 = vld [vmem:[%s166 + $0x20] sm:$0xff]
      %v180 = vld [vmem:[%s166 + $0x28] sm:$0xff]
      %v181 = vld [vmem:[%s166 + $0x30] sm:$0xff]
      %v182 = vld [vmem:[%s166 + $0x38] sm:$0xff]
      %v183 = vpack.c.bf16 %v176, %v175
      %v184 = vpack.c.bf16 %v178, %v177
      %v185 = vpack.c.bf16 %v180, %v179
      %v186 = vpack.c.bf16 %v182, %v181
      %v187 = vld [vmem:[%s1] sm:$0xf]
      %v188 = vld [vmem:[%s1 + $0x4] sm:$0xf]
      %v189 = vld [vmem:[%s1 + $0x8] sm:$0xf]
      %v190 = vld [vmem:[%s1 + $0xc] sm:$0xf]
      %v191 = vld [vmem:[%s1 + $0x10] sm:$0xf]
      %v192 = vld [vmem:[%s1 + $0x14] sm:$0xf]
      %v193 = vld [vmem:[%s1 + $0x18] sm:$0xf]
      %v194 = vld [vmem:[%s1 + $0x1c] sm:$0xf]
      %v195 = vld [vmem:[%s1 + $0x20] sm:$0xf]
      %v196 = vld [vmem:[%s1 + $0x24] sm:$0xf]
      %v197 = vld [vmem:[%s1 + $0x28] sm:$0xf]
      %v198 = vld [vmem:[%s1 + $0x2c] sm:$0xf]
      %v199 = vld [vmem:[%s2] sm:$0x1]
      %v201 = vlaneseq
      %v202 = vshrl.u32 %v201, 7
      %v203 = vsub.s32 0, %v202
      %v204 = vrot.slane %v199, %v203
      %v218 = vunpack.c.l.b16 %v187
      %v219 = vunpack.c.l.b16 %v188
      %v220 = vunpack.c.l.b16 %v189
      %v221 = vunpack.c.l.b16 %v190
      %v222 = vunpack.c.l.b16 %v191
      %v223 = vunpack.c.l.b16 %v192
      %v224 = vunpack.c.l.b16 %v193
      %v225 = vunpack.c.l.b16 %v194
      %v226 = vunpack.c.l.b16 %v195
      %v227 = vunpack.c.l.b16 %v196
      %v228 = vunpack.c.l.b16 %v197
      %v229 = vunpack.c.l.b16 %v198
      %v230 = vpack.c.b16 %v219, %v218
      %v231 = vpack.c.b16 %v221, %v220
      %v232 = vpack.c.b16 %v223, %v222
      %v233 = vpack.c.b16 %v225, %v224
      %v234 = vpack.c.b16 %v227, %v226
      %v235 = vpack.c.b16 %v229, %v228
      %vm242 = vcmask 785408
      %v244 = vsel %vm242, %v183, 0
      %v247 = vsel %vm242, %v184, 0
      %v250 = vsel %vm242, %v185, 0
      %v253 = vsel %vm242, %v186, 0
      %255 = vmatprep.subr.bf16.mxu0 0
      %256 = vmatpush1.bf16.msra.mxu0 %v230
      %257 = vmatprep.subr.bf16.mxu0 0
      %258 = vmatpush1.bf16.msra.mxu0 %v231
      %259 = vmatprep.subr.bf16.mxu0 0
      %260 = vmatpush1.bf16.msra.mxu0 %v232
      %261 = vmatprep.subr.bf16.mxu0 0
      %262 = vmatpush1.bf16.msra.mxu0 %v233
      %263 = vmatprep.subr.bf16.mxu0 0
      %264 = vmatpush1.bf16.msra.mxu0 %v234
      %265 = vmatprep.subr.bf16.mxu0 0
      %266 = vmatpush1.bf16.msra.mxu0 %v235
      %267 = vmatprep.subr.bf16.mxu0 0
      %268 = vmatpush1.bf16.msra.mxu0 0
      %269 = vmatprep.subr.bf16.mxu0 0
      %270 = vmatpush1.bf16.msra.mxu0 0
      %271 = vmatprep.subr.bf16.mxu0 0
      %272 = vmatpush1.bf16.msra.mxu0 0
      %273 = vmatprep.subr.bf16.mxu0 0
      %274 = vmatpush1.bf16.msra.mxu0 0
      %275 = vmatprep.subr.bf16.mxu0 0
      %276 = vmatpush1.bf16.msra.mxu0 0
      %277 = vmatprep.subr.bf16.mxu0 0
      %278 = vmatpush1.bf16.msra.mxu0 0
      %279 = vmatprep.subr.bf16.mxu0 0
      %280 = vmatpush1.bf16.msra.mxu0 0
      %281 = vmatprep.subr.bf16.mxu0 0
      %282 = vmatpush1.bf16.msra.mxu0 0
      %283 = vmatprep.subr.bf16.mxu0 0
      %284 = vmatpush1.bf16.msra.mxu0 0
      %285 = vmatprep.subr.bf16.mxu0 0
      %286 = vmatpush1.bf16.msra.mxu0 0
      %287 = vmatprep.mubr.bf16.mxu0 0
      %288 = vmatmul.mubr.bf16.gmra.mrb[0].mxu0 %v244
      %v289 = vpop.f32.mrb[0].mxu0
      %v290 = vadd.f32 %v204, %v289
      %v291 = vpop.f32.mrb[0].mxu0
      %v292 = vpop.f32.mrb[0].mxu0
      %v293 = vadd.f32 %v204, %v292
      %v294 = vpop.f32.mrb[0].mxu0
      %295 = vmatprep.mubr.bf16.mxu0 0
      %296 = vmatmul.mubr.bf16.gmra.mrb[0].mxu0 %v247
      %v297 = vpop.f32.mrb[0].mxu0
      %v298 = vadd.f32 %v204, %v297
      %v299 = vpop.f32.mrb[0].mxu0
      %v300 = vpop.f32.mrb[0].mxu0
      %v301 = vadd.f32 %v204, %v300
      %v302 = vpop.f32.mrb[0].mxu0
      %303 = vmatprep.mubr.bf16.mxu0 0
      %304 = vmatmul.mubr.bf16.gmra.mrb[0].mxu0 %v250
      %v305 = vpop.f32.mrb[0].mxu0
      %v306 = vadd.f32 %v204, %v305
      %v307 = vpop.f32.mrb[0].mxu0
      %v308 = vpop.f32.mrb[0].mxu0
      %v309 = vadd.f32 %v204, %v308
      %v310 = vpop.f32.mrb[0].mxu0
      %311 = vmatprep.mubr.bf16.mxu0 0
      %312 = vmatmul.mubr.bf16.gmra.mrb[0].mxu0 %v253
      %v313 = vpop.f32.mrb[0].mxu0
      %v314 = vadd.f32 %v204, %v313
      %v315 = vpop.f32.mrb[0].mxu0
      %v316 = vpop.f32.mrb[0].mxu0
      %v317 = vadd.f32 %v204, %v316
      %v318 = vpop.f32.mrb[0].mxu0
      %319 = vdwg.mxu0
      %vm320 = vcmask 392192
      %321 = vst.msk [vmem:[%s172] sm:$0xff] %vm320, %v290
      %322 = vst.msk [vmem:[%s172 + $0x8] sm:$0xff] %vm320, %v293
      %323 = vst.msk [vmem:[%s172 + $0x10] sm:$0xff] %vm320, %v298
      %324 = vst.msk [vmem:[%s172 + $0x18] sm:$0xff] %vm320, %v301
      %325 = vst.msk [vmem:[%s172 + $0x20] sm:$0xff] %vm320, %v306
      %326 = vst.msk [vmem:[%s172 + $0x28] sm:$0xff] %vm320, %v309
      %327 = vst.msk [vmem:[%s172 + $0x30] sm:$0xff] %vm320, %v314
      %328 = vst.msk [vmem:[%s172 + $0x38] sm:$0xff] %vm320, %v317
      %s329 = smul.u32 8, %s14
      %p330 = scmp.lt.s32.totalorder %s329, 15
      %s331 = scalar_select %p330, %s329, 15
      %s332 = smul.addr %s331, 8
      %s333 = scalar_lea.vmem %s3, %s332
      // Predicated region
      $region33: #{tpu_custom_call.1} parent=31 // pred_check
        %p334 = pneg %p100
      $region34: #{tpu_custom_call.1} parent=31 // pred_check_branch
        %336 = sbr.rel (%p334) target = $region36
      $region35: #{tpu_custom_call.1} parent=31 // pred_region
        %s337 = smul.u32 8, %s14
      $region36: #{tpu_custom_call.1} parent=31 // pred_fallthru
        _
    $region32: #{tpu_custom_call.1} parent=5 // pred_fallthru
      _
    %p338 = scmp.le.s32.totalorder 2, %s9
    // Predicated region
    $region37: #{tpu_custom_call.1} parent=5 // pred_check
      %p339 = pneg %p338
    $region38: #{tpu_custom_call.1} parent=5 // pred_check_branch
      %341 = sbr.rel (%p339) target = $region40
    $region39: #{tpu_custom_call.1} parent=5 // pred_region
      %s342 = ssub.s32 %s9, 2
      // Predicated region
      $region41: #{tpu_custom_call.1} parent=39 // pred_check
        %p343 = pneg %p106
      $region42: #{tpu_custom_call.1} parent=39 // pred_check_branch
        %345 = sbr.rel (%p343) target = $region44
      $region43: #{tpu_custom_call.1} parent=39 // pred_region
        %s346 = smul.u32 8, %s15
        %p347 = scmp.lt.s32.totalorder %s346, 15
        %s348 = scalar_select %p347, %s346, 15
        %s349 = smul.addr %s348, 8
        %s350 = scalar_lea.vmem %s3, %s349
      $region44: #{tpu_custom_call.1} parent=39 // pred_fallthru
        _
    $region40: #{tpu_custom_call.1} parent=5 // pred_fallthru
      _
  $region6: #{tpu_custom_call.1} parent=0 // loop_footer
    %s13 = sadd.s32 1, %s9
  $region7: #{tpu_custom_call.1} parent=0 // loop_footer_branch
    %8 = sbr.rel target = $region3
  $region8: #{tpu_custom_call.1} parent=0 // loop_exit
    _

</llo_original>
